<compile_context>
chip_gen: v6e
topology: v6e:2x2x1
jax: 0.10.0
libtpu: 0.0.40
codegen_flags: <defaults>
</compile_context>

<pallas_src>
import functools

import jax
import jax.numpy as jnp
import numpy as np
from jax.experimental import pallas as pl
from jax.experimental.pallas import tpu as pltpu


# =============================================================================
# Linear: y = x @ Wt + b   (Wt pre-transposed to (K, N), bf16; row-tiled)
# =============================================================================
def _linear_kernel(x_ref, wt_ref, b_ref, o_ref):
    x = x_ref[...].astype(jnp.bfloat16)
    o_ref[...] = jnp.dot(x, wt_ref[...],
                         preferred_element_type=jnp.float32) + b_ref[...]


def linear(x, wt_bf16, b, tm=256):
    M, K = x.shape
    N = wt_bf16.shape[1]
    tm = min(tm, M)
    return pl.pallas_call(
        _linear_kernel,
        grid=(pl.cdiv(M, tm),),
        in_specs=[pl.BlockSpec((tm, K), lambda i: (i, 0)),
                  pl.BlockSpec((K, N), lambda i: (0, 0)),
                  pl.BlockSpec((1, N), lambda i: (0, 0))],
        out_specs=pl.BlockSpec((tm, N), lambda i: (i, 0)),
        out_shape=jax.ShapeDtypeStruct((M, N), jnp.float32),
        compiler_params=pltpu.CompilerParams(
            dimension_semantics=("parallel",)),
    )(x, wt_bf16, b.reshape(1, N))


# =============================================================================
# Fused relative attention kernel, grid = (bsz,).  All heads per grid step.
# =============================================================================
def _rel_attn_kernel(qkv_ref, rk_ref, rw_ref, rr_ref, mask_ref, o_ref, *,
                     n_head, d_head, scale):
    qlen = qkv_ref.shape[0]

    q = qkv_ref[:, 0, 0, :]              # (qlen, H)  f32
    k = qkv_ref[:, 0, 1, :]              # (klen, H)
    v = qkv_ref[:, 0, 2, :]              # (klen, H)
    rk = rk_ref[...]                     # (rlen, H)
    mask_add = mask_ref[...]             # (qlen, klen) additive f32 (0 / -1e30)

    # bias adds in f32 (all heads at once, lane-dense), cast at MXU boundary
    q_rw = (q + rw_ref[...]).astype(jnp.bfloat16)
    q_rr = (q + rr_ref[...]).astype(jnp.bfloat16)
    k_b = k.astype(jnp.bfloat16)
    rk_b = rk.astype(jnp.bfloat16)

    # Per-row left-shift amounts for the Transformer-XL rel_shift:
    # BD[i, j] = BD_raw[i, j + (qlen - 1 - i)].  Wrapped lanes land only in
    # positions the (causal) mask removes.
    row = jax.lax.broadcasted_iota(jnp.int32, (qlen, 1), 0)
    shift = (qlen - 1) - row
    nbits = max(int(qlen - 1).bit_length(), 0)

    dims = (((1,), (1,)), ((), ()))
    outs = []
    for h in range(n_head):
        sl = slice(h * d_head, (h + 1) * d_head)
        ac = jax.lax.dot_general(q_rw[:, sl], k_b[:, sl], dims,
                                 preferred_element_type=jnp.float32)
        bd = jax.lax.dot_general(q_rr[:, sl], rk_b[:, sl], dims,
                                 preferred_element_type=jnp.float32)
        # in-register rel_shift via binary decomposition of per-row roll
        for kbit in range(nbits):
            amt = 1 << kbit
            rolled = jnp.roll(bd, shift=-amt, axis=-1)   # left roll by amt
            take = ((shift >> kbit) & 1) == 1
            bd = jnp.where(take, rolled, bd)

        score = scale * (ac + bd) + mask_add
        m = jnp.max(score, axis=-1, keepdims=True)
        p = jnp.exp(score - m)
        denom = jnp.sum(p, axis=-1, keepdims=True)
        p = p * pl.reciprocal(denom, approx=True)

        av = jnp.dot(p.astype(jnp.bfloat16), v[:, sl].astype(jnp.bfloat16),
                     preferred_element_type=jnp.float32)
        outs.append(av)

    o_ref[:, 0, 0, :] = jnp.concatenate(outs, axis=-1)


def rel_attention(qkv4, rk, rw_flat, rr_flat, mask_add, *,
                  n_head, d_head, scale):
    qlen, bsz, _, H = qkv4.shape
    rlen = rk.shape[0]
    klen = mask_add.shape[1]
    kern = functools.partial(_rel_attn_kernel, n_head=n_head,
                             d_head=d_head, scale=scale)
    return pl.pallas_call(
        kern,
        grid=(bsz,),
        in_specs=[
            pl.BlockSpec((qlen, 1, 3, H), lambda b: (0, b, 0, 0)),
            pl.BlockSpec((rlen, H), lambda b: (0, 0)),     # resident across b
            pl.BlockSpec((1, H), lambda b: (0, 0)),
            pl.BlockSpec((1, H), lambda b: (0, 0)),
            pl.BlockSpec((qlen, klen), lambda b: (0, 0)),  # resident across b
        ],
        out_specs=pl.BlockSpec((qlen, 1, 1, H), lambda b: (0, b, 0, 0)),
        out_shape=jax.ShapeDtypeStruct((qlen, bsz, 1, H), jnp.float32),
        compiler_params=pltpu.CompilerParams(
            dimension_semantics=("parallel",)),
    )(qkv4, rk, rw_flat, rr_flat, mask_add)


# =============================================================================
# Fused o_net + residual + LN1 + FF(relu) + residual + LN2, row-tiled.
# =============================================================================
def _attn_out_ff_kernel(av_ref, w_ref, wot_ref, bo_ref, g1_ref, be1_ref,
                        w1t_ref, b1_ref, w2t_ref, b2_ref, g2_ref, be2_ref,
                        o_ref):
    av = av_ref[...].astype(jnp.bfloat16)
    attn_out = jnp.dot(av, wot_ref[...],
                       preferred_element_type=jnp.float32) + bo_ref[...]
    x = w_ref[...] + attn_out
    mu = jnp.mean(x, axis=-1, keepdims=True)
    var = jnp.mean((x - mu) ** 2, axis=-1, keepdims=True)
    y1 = (x - mu) * jax.lax.rsqrt(var + 1e-5) * g1_ref[...] + be1_ref[...]

    h = jnp.dot(y1.astype(jnp.bfloat16), w1t_ref[...],
                preferred_element_type=jnp.float32) + b1_ref[...]
    h = jnp.maximum(h, 0.0)                                    # ReLU
    core = jnp.dot(h.astype(jnp.bfloat16), w2t_ref[...],
                   preferred_element_type=jnp.float32) + b2_ref[...]
    y = y1 + core
    mu2 = jnp.mean(y, axis=-1, keepdims=True)
    var2 = jnp.mean((y - mu2) ** 2, axis=-1, keepdims=True)
    o_ref[...] = (y - mu2) * jax.lax.rsqrt(var2 + 1e-5) * g2_ref[...] \
        + be2_ref[...]


def attn_out_ff(av, w2d, pp, tm=256):
    M, H = av.shape
    D = w2d.shape[1]
    Di = pp['ff1_wt'].shape[1]
    tm = min(tm, M)
    row = lambda i: (i, 0)
    full = lambda i: (0, 0)
    return pl.pallas_call(
        _attn_out_ff_kernel,
        grid=(pl.cdiv(M, tm),),
        in_specs=[pl.BlockSpec((tm, H), row),
                  pl.BlockSpec((tm, D), row),
                  pl.BlockSpec((H, D), full),
                  pl.BlockSpec((1, D), full),
                  pl.BlockSpec((1, D), full),
                  pl.BlockSpec((1, D), full),
                  pl.BlockSpec((D, Di), full),
                  pl.BlockSpec((1, Di), full),
                  pl.BlockSpec((Di, D), full),
                  pl.BlockSpec((1, D), full),
                  pl.BlockSpec((1, D), full),
                  pl.BlockSpec((1, D), full)],
        out_specs=pl.BlockSpec((tm, D), row),
        out_shape=jax.ShapeDtypeStruct((M, D), jnp.float32),
        compiler_params=pltpu.CompilerParams(
            dimension_semantics=("parallel",)),
    )(av, w2d, pp['o_wt'], pp['o_b'], pp['ln1_g'], pp['ln1_b'],
      pp['ff1_wt'], pp['ff1_b'], pp['ff2_wt'], pp['ff2_b'],
      pp['ln2_g'], pp['ln2_b'])


# =============================================================================
# Param prep: one-time transpose (N,K)->(K,N), bf16 weight cast, bias reshape.
# =============================================================================
def prepare_params(P):
    D = P['o_w'].shape[0]
    Di = P['ff1_w'].shape[0]
    bf = jnp.bfloat16
    f32 = jnp.float32
    return {
        'qkv_wt': P['qkv_w'].T.astype(bf),
        'qkv_b': P['qkv_b'].astype(f32),
        'r_wt': P['r_w'].T.astype(bf),
        'r_b': P['r_b'].astype(f32),
        'o_wt': P['o_w'].T.astype(bf),
        'o_b': P['o_b'].reshape(1, D).astype(f32),
        'ln1_g': P['ln1_g'].reshape(1, D).astype(f32),
        'ln1_b': P['ln1_b'].reshape(1, D).astype(f32),
        'ff1_wt': P['ff1_w'].T.astype(bf),
        'ff1_b': P['ff1_b'].reshape(1, Di).astype(f32),
        'ff2_wt': P['ff2_w'].T.astype(bf),
        'ff2_b': P['ff2_b'].reshape(1, D).astype(f32),
        'ln2_g': P['ln2_g'].reshape(1, D).astype(f32),
        'ln2_b': P['ln2_b'].reshape(1, D).astype(f32),
    }


# =============================================================================
# Full decoder layer forward (pre_lnorm=False, dropout identity)
# =============================================================================
def decoder_layer_forward(w, r, r_w_bias, r_r_bias, attn_mask, pp,
                          n_head, d_head, scale):
    qlen, bsz, d_model = w.shape
    rlen = r.shape[0]
    klen = qlen                       # no external memory segment
    assert rlen == klen, "kernel assumes rlen == klen (Transformer-XL, no mems)"
    H = n_head * d_head
    M = qlen * bsz

    w2d = w.reshape(M, d_model)
    qkv = linear(w2d, pp['qkv_wt'], pp['qkv_b'])     # (M, 3H)
    rk = linear(r, pp['r_wt'], pp['r_b'])            # (rlen, H)

    qkv4 = qkv.reshape(qlen, bsz, 3, H)              # free view, no transpose
    mask_add = attn_mask.astype(jnp.float32) * jnp.float32(-1e30)

    attn_vec = rel_attention(qkv4, rk,
                             r_w_bias.reshape(1, H), r_r_bias.reshape(1, H),
                             mask_add, n_head=n_head, d_head=d_head,
                             scale=scale)
    av2d = attn_vec.reshape(M, H)                    # (q, b)-major, free view

    out2d = attn_out_ff(av2d, w2d, pp)
    return out2d.reshape(qlen, bsz, d_model)


# =============================================================================
# Pure-JAX reference (exact PyTorch semantics, dropout=0)
# =============================================================================
def _rel_shift_ref(x):
    b, n, q, rr = x.shape
    zero_pad = jnp.zeros((b, n, q, 1), x.dtype)
    x_padded = jnp.concatenate([zero_pad, x], axis=3)
    x_padded = x_padded.reshape(b, n, rr + 1, q)
    return x_padded[:, :, 1:, :].reshape(b, n, q, rr)


def _layer_norm(x, g, b, eps=1e-5):
    mean = jnp.mean(x, axis=-1, keepdims=True)
    var = jnp.mean((x - mean) ** 2, axis=-1, keepdims=True)
    return (x - mean) / jnp.sqrt(var + eps) * g + b


def reference_forward(w, r, r_w_bias, r_r_bias, mask_bool, P,
                      n_head, d_head, scale):
    qlen, bsz, d_model = w.shape
    rlen = r.shape[0]
    w_heads = w @ P['qkv_w'].T + P['qkv_b']
    r_head_k = r @ P['r_w'].T + P['r_b']
    w_head_q, w_head_k, w_head_v = jnp.split(w_heads, 3, axis=-1)
    klen = w_head_k.shape[0]
    w_head_q = w_head_q.reshape(qlen, bsz, n_head, d_head)
    w_head_k = w_head_k.reshape(klen, bsz, n_head, d_head)
    w_head_v = w_head_v.reshape(klen, bsz, n_head, d_head)
    r_head_k = r_head_k.reshape(rlen, n_head, d_head)
    AC = jnp.einsum('ibnd,jbnd->bnij', w_head_q + r_w_bias, w_head_k)
    BD = jnp.einsum('ibnd,jnd->bnij', w_head_q + r_r_bias, r_head_k)
    BD = _rel_shift_ref(BD)
    attn_score = scale * (AC + BD)
    attn_score = jnp.where(mask_bool[None, None], -jnp.inf, attn_score)
    attn_prob = jax.nn.softmax(attn_score, axis=3)
    attn_vec = jnp.einsum('bnij,jbnd->ibnd', attn_prob, w_head_v)
    attn_vec = attn_vec.reshape(qlen, bsz, n_head * d_head)
    attn_out = attn_vec @ P['o_w'].T + P['o_b']
    out = _layer_norm(w + attn_out, P['ln1_g'], P['ln1_b'])
    h = jnp.maximum(out @ P['ff1_w'].T + P['ff1_b'], 0.0)
    core = h @ P['ff2_w'].T + P['ff2_b']
    return _layer_norm(out + core, P['ln2_g'], P['ln2_b'])


if __name__ == "__main__":
    n_head, d_model, d_head, d_inner = 2, 32, 16, 64
    qlen, bsz = 16, 2
    rlen, klen = qlen, qlen
    scale = 1.0 / d_head ** 0.5

    key = jax.random.PRNGKey(0)
    ks = jax.random.split(key, 16)
    init = lambda k, shape, s=0.02: s * jax.random.normal(k, shape, jnp.float32)

    P = {
        'qkv_w': init(ks[0], (3 * n_head * d_head, d_model)),
        'qkv_b': init(ks[1], (3 * n_head * d_head,)),
        'r_w':   init(ks[2], (n_head * d_head, d_model)),
        'r_b':   init(ks[3], (n_head * d_head,)),
        'o_w':   init(ks[4], (d_model, n_head * d_head)),
        'o_b':   init(ks[5], (d_model,)),
        'ln1_g': jnp.ones((d_model,), jnp.float32),
        'ln1_b': jnp.zeros((d_model,), jnp.float32),
        'ff1_w': init(ks[6], (d_inner, d_model)),
        'ff1_b': init(ks[7], (d_inner,)),
        'ff2_w': init(ks[8], (d_model, d_inner)),
        'ff2_b': init(ks[9], (d_model,)),
        'ln2_g': jnp.ones((d_model,), jnp.float32),
        'ln2_b': jnp.zeros((d_model,), jnp.float32),
    }
    r_w_bias = init(ks[10], (n_head, d_head))
    r_r_bias = init(ks[11], (n_head, d_head))

    w = jax.random.normal(ks[12], (qlen, bsz, d_model), jnp.float32)
    r = jax.random.normal(ks[13], (rlen, d_model), jnp.float32)
    dec_attn_mask = jnp.triu(jnp.ones((qlen, klen), jnp.bool_), k=1)  # causal

    pp = prepare_params(P)
    out = decoder_layer_forward(w, r, r_w_bias, r_r_bias, dec_attn_mask, pp,
                                n_head, d_head, scale)
    out = jax.block_until_ready(out)

    ref = reference_forward(w, r, r_w_bias, r_r_bias, dec_attn_mask, P,
                            n_head, d_head, scale)
    np.testing.assert_allclose(np.asarray(out), np.asarray(ref),
                               rtol=2e-2, atol=2e-2)
    print("KERNEL_OK")
</pallas_src>

<mosaic_0001>
module attributes {stable_mosaic.version = 11 : i64} {
  func.func @_linear_kernel(%arg0: i32, %arg1: memref<32x32xf32, #tpu.memory_space<vmem>>, %arg2: memref<32x96xbf16, #tpu.memory_space<vmem>>, %arg3: memref<1x96xf32, #tpu.memory_space<vmem>>, %arg4: memref<32x96xf32, #tpu.memory_space<vmem>>) attributes {dimension_semantics = [#tpu.dimension_semantics<parallel>], iteration_bounds = array<i64: 1>, scalar_prefetch = 0 : i64, scratch_operands = 0 : i64, tpu.core_type = #tpu.core_type<tc>, window_params = [{transform_indices = @transform_0, window_bounds = array<i64: 32, 32>}, {pipeline_mode = #tpu.pipeline_mode<synchronous>, transform_indices = @transform_1, window_bounds = array<i64: 32, 96>}, {pipeline_mode = #tpu.pipeline_mode<synchronous>, transform_indices = @transform_2, window_bounds = array<i64: 1, 96>}, {transform_indices = @transform_3, window_bounds = array<i64: 32, 96>}]} {
    %c0 = arith.constant 0 : index
    %c0_0 = arith.constant 0 : index
    %0 = vector.load %arg1[%c0, %c0_0] : memref<32x32xf32, #tpu.memory_space<vmem>>, vector<32x32xf32>
    %1 = arith.truncf %0 : vector<32x32xf32> to vector<32x32xbf16>
    %c0_1 = arith.constant 0 : index
    %c0_2 = arith.constant 0 : index
    %2 = vector.load %arg2[%c0_1, %c0_2] : memref<32x96xbf16, #tpu.memory_space<vmem>>, vector<32x96xbf16>
    %cst = arith.constant dense<0.000000e+00> : vector<32x96xf32>
    %3 = tpu.matmul %1, %2, %cst {dimension_numbers = #tpu.dot_dimension_numbers<[1], [0], [0], [1], [0, 0, 1, 1], [], []>} : vector<32x32xbf16>, vector<32x96xbf16>, vector<32x96xf32> -> vector<32x96xf32>
    %c0_3 = arith.constant 0 : index
    %c0_4 = arith.constant 0 : index
    %4 = vector.load %arg3[%c0_3, %c0_4] : memref<1x96xf32, #tpu.memory_space<vmem>>, vector<1x96xf32>
    %5 = vector.broadcast %4 : vector<1x96xf32> to vector<32x96xf32>
    %6 = arith.addf %3, %5 : vector<32x96xf32>
    %c0_5 = arith.constant 0 : index
    %c0_6 = arith.constant 0 : index
    %7 = vector.load %arg4[%c0_5, %c0_6] : memref<32x96xf32, #tpu.memory_space<vmem>>, vector<32x96xf32>
    tpu.vector_store %arg4[%c0_5, %c0_6], %6 {strides = array<i32>} : memref<32x96xf32, #tpu.memory_space<vmem>>, vector<32x96xf32>,
    return
  }
  func.func @transform_0(%arg0: i32) -> (i32, i32) {
    %c0_i32 = arith.constant 0 : i32
    %c0_i32_0 = arith.constant 0 : i32
    return %arg0, %c0_i32 : i32, i32
  }
  func.func @transform_1(%arg0: i32) -> (i32, i32) {
    %c0_i32 = arith.constant 0 : i32
    %c0_i32_0 = arith.constant 0 : i32
    %c0_i32_1 = arith.constant 0 : i32
    return %c0_i32, %c0_i32_0 : i32, i32
  }
  func.func @transform_2(%arg0: i32) -> (i32, i32) {
    %c0_i32 = arith.constant 0 : i32
    %c0_i32_0 = arith.constant 0 : i32
    %c0_i32_1 = arith.constant 0 : i32
    return %c0_i32, %c0_i32_0 : i32, i32
  }
  func.func @transform_3(%arg0: i32) -> (i32, i32) {
    %c0_i32 = arith.constant 0 : i32
    %c0_i32_0 = arith.constant 0 : i32
    return %arg0, %c0_i32 : i32, i32
  }
}

</mosaic_0001>

<llo_original>
// kernel: tpu_custom_call.1
$region0: #{tpu_custom_call.1}
  #allocation0 [shape = 'u32[]', space=smem, size = 0x4, offset = 0x4, fixed_abs, tag = 'smem constant byte address 0x4 - core index']
  #allocation1 [shape = 'u32[144,128]{1,0:T(1,128)}', space=vmem, size = 0x12000, scoped, tag = 'internal scratch']
  %s0 = inlined_call_operand.hbm [shape: f32[32,32], index: 0, kind: input, shape index: {}]
  %s1 = inlined_call_operand.hbm [shape: bf16[32,96], index: 1, kind: input, shape index: {}]
  %s2 = inlined_call_operand.vmem [shape: f32[1,96], index: 2, kind: input, shape index: {}]
  %s3 = inlined_call_operand.hbm [shape: f32[32,96], index: 3, kind: output, shape index: {}]
  %s4 = sld [smem:[#allocation0]]
  $region30: #{tpu_custom_call.1} parent=0
    _
  %s6 = ssub.s32 1, %s4
  %s7 = scalar_select 0, %s6, %s4
  $region1: #{tpu_custom_call.1} parent=0
    #allocation2 [shape = 'u8[16384]{0}', space=vmem, size = 0x4000, scoped, tag = 'input window, operand 0, single buffered']
    #allocation3 [shape = 's32[1]{0}', space=sflag, size = 0x4, scoped, tag = 'scoped memory for tpu_custom_call.1']
    #allocation4 [shape = 's32[1]{0}', space=sflag, size = 0x4, scoped, tag = 'scoped memory for tpu_custom_call.1']
    #allocation5 [shape = 'u8[8192]{0}', space=vmem, size = 0x2000, scoped, tag = 'input window, operand 1, single buffered']
    #allocation6 [shape = 's32[1]{0}', space=sflag, size = 0x4, scoped, tag = 'scoped memory for tpu_custom_call.1']
    #allocation7 [shape = 'u8[16384]{0}', space=vmem, size = 0x4000, scoped, tag = 'output window, operand 0, single buffered']
    %8 = vsyncpa [#allocation3], 0
    %9 = vsyncpa [#allocation6], 0
    %10 = vsyncpa [#allocation4], 0
    // Predicated region
    $region2: #{tpu_custom_call.1} parent=1 // pred_check
      _
    $region3: #{tpu_custom_call.1} parent=1 // pred_check_branch
      %12 = sbr.rel (0) target = $region5
    $region4: #{tpu_custom_call.1} parent=1 // pred_region
      %s14 = ssub.s32 512, 512
      %15 = vsyncadd [#allocation3], %s14
      %s16 = sshll.u32 [#allocation2], 4
      %s17 = int_to_ptr.vmem [resolvable:$true] %s16
      %22 = dma.hbm_to_vmem [thread:$0]  %s0, 512, %s17, [#allocation3], 128, 128, 8
    $region5: #{tpu_custom_call.1} parent=1 // pred_fallthru
      _
    // Predicated region
    $region6: #{tpu_custom_call.1} parent=1 // pred_check
      _
    $region7: #{tpu_custom_call.1} parent=1 // pred_check_branch
      %24 = sbr.rel (0) target = $region9
    $region8: #{tpu_custom_call.1} parent=1 // pred_region
      %s26 = ssub.s32 256, 256
      %27 = vsyncadd [#allocation6], %s26
      %s28 = sshll.u32 [#allocation5], 4
      %s29 = int_to_ptr.vmem [resolvable:$true] %s28
      %34 = dma.hbm_to_vmem [thread:$0]  %s1, 256, %s29, [#allocation6], 64, 64, 4
    $region9: #{tpu_custom_call.1} parent=1 // pred_fallthru
      _
    // Predicated region
    $region10: #{tpu_custom_call.1} parent=1 // pred_check
      _
    $region11: #{tpu_custom_call.1} parent=1 // pred_check_branch
      %36 = sbr.rel (0) target = $region13
    $region12: #{tpu_custom_call.1} parent=1 // pred_region
      _
    $region13: #{tpu_custom_call.1} parent=1 // pred_fallthru
      _
    // Predicated region
    $region14: #{tpu_custom_call.1} parent=1 // pred_check
      _
    $region15: #{tpu_custom_call.1} parent=1 // pred_check_branch
      %38 = sbr.rel (0) target = $region17
    $region16: #{tpu_custom_call.1} parent=1 // pred_region
      %39 = dma.done [#allocation3], 512
    $region17: #{tpu_custom_call.1} parent=1 // pred_fallthru
      _
    // Predicated region
    $region18: #{tpu_custom_call.1} parent=1 // pred_check
      _
    $region19: #{tpu_custom_call.1} parent=1 // pred_check_branch
      %41 = sbr.rel (0) target = $region21
    $region20: #{tpu_custom_call.1} parent=1 // pred_region
      %42 = dma.done [#allocation6], 256
    $region21: #{tpu_custom_call.1} parent=1 // pred_fallthru
      _
    %v44 = vld [vmem:[#allocation2] sm:$0xff]
    %v45 = vld [vmem:[#allocation2 + $0x8] sm:$0xff]
    %v46 = vld [vmem:[#allocation2 + $0x10] sm:$0xff]
    %v47 = vld [vmem:[#allocation2 + $0x18] sm:$0xff]
    %v48 = vpack.c.bf16 %v45, %v44
    %v49 = vpack.c.bf16 %v47, %v46
    %v50 = vld [vmem:[#allocation5] sm:$0xf]
    %v51 = vld [vmem:[#allocation5 + $0x4] sm:$0xf]
    %v52 = vld [vmem:[#allocation5 + $0x8] sm:$0xf]
    %v53 = vld [vmem:[#allocation5 + $0xc] sm:$0xf]
    %v54 = vld [vmem:[%s2] sm:$0x1]
    %v56 = vlaneseq
    %v57 = vshrl.u32 %v56, 7
    %v58 = vsub.s32 0, %v57
    %v59 = vrot.slane %v54, %v58
    %v65 = vunpack.c.l.b16 %v50
    %v66 = vunpack.c.l.b16 %v51
    %v67 = vunpack.c.l.b16 %v52
    %v68 = vunpack.c.l.b16 %v53
    %v69 = vpack.c.b16 %v66, %v65
    %v70 = vpack.c.b16 %v68, %v67
    %vm73 = vcmask 261120
    %v75 = vsel %vm73, %v48, 0
    %v78 = vsel %vm73, %v49, 0
    %80 = vmatprep.subr.bf16.mxu0 0
    %81 = vmatpush1.bf16.msra.mxu0 0
    %82 = vmatprep.subr.bf16.mxu0 0
    %83 = vmatpush1.bf16.msra.mxu0 0
    %84 = vmatprep.subr.bf16.mxu0 0
    %85 = vmatpush1.bf16.msra.mxu0 0
    %86 = vmatprep.subr.bf16.mxu0 0
    %87 = vmatpush1.bf16.msra.mxu0 0
    %88 = vmatprep.subr.bf16.mxu0 0
    %89 = vmatpush1.bf16.msra.mxu0 0
    %90 = vmatprep.subr.bf16.mxu0 0
    %91 = vmatpush1.bf16.msra.mxu0 0
    %92 = vmatprep.subr.bf16.mxu0 0
    %93 = vmatpush1.bf16.msra.mxu0 %v70
    %94 = vmatprep.subr.bf16.mxu0 0
    %95 = vmatpush1.bf16.msra.mxu0 %v69
    %96 = vmatprep.subr.bf16.mxu0 0
    %97 = vmatpush2.bf16.msra.mxu0 0
    %98 = vmatprep.subr.bf16.mxu0 0
    %99 = vmatpush2.bf16.msra.mxu0 0
    %100 = vmatprep.subr.bf16.mxu0 0
    %101 = vmatpush2.bf16.msra.mxu0 0
    %102 = vmatprep.subr.bf16.mxu0 0
    %103 = vmatpush2.bf16.msra.mxu0 0
    %104 = vmatprep.subr.bf16.mxu0 0
    %105 = vmatpush2.bf16.msra.mxu0 0
    %106 = vmatprep.subr.bf16.mxu0 0
    %107 = vmatpush2.bf16.msra.mxu0 0
    %108 = vmatprep.subr.bf16.mxu0 0
    %109 = vmatpush2.bf16.msra.mxu0 0
    %110 = vmatprep.subr.bf16.mxu0 0
    %111 = vmatpush2.bf16.msra.mxu0 0
    %112 = vmatprep.mubr.bf16.mxu0 0
    %113 = vmatmul.mubr.bf16.gmra.mxu0 %v75
    %v114 = vpop.f32.mrf.mxu0
    %v115 = vadd.f32 %v59, %v114
    %v116 = vpop.f32.mrf.mxu0
    %v117 = vpop.f32.mrf.mxu0
    %v118 = vadd.f32 %v59, %v117
    %v119 = vpop.f32.mrf.mxu0
    %120 = vmatprep.mubr.bf16.mxu0 0
    %121 = vmatmul.mubr.bf16.gmra.mxu0 %v78
    %v122 = vpop.f32.mrf.mxu0
    %v123 = vadd.f32 %v59, %v122
    %v124 = vpop.f32.mrf.mxu0
    %v125 = vpop.f32.mrf.mxu0
    %v126 = vadd.f32 %v59, %v125
    %v127 = vpop.f32.mrf.mxu0
    %128 = vdwg.mxu0
    %vm129 = vcmask 785408
    %130 = vst.msk [vmem:[#allocation7] sm:$0xff] %vm129, %v115
    %131 = vst.msk [vmem:[#allocation7 + $0x8] sm:$0xff] %vm129, %v118
    %132 = vst.msk [vmem:[#allocation7 + $0x10] sm:$0xff] %vm129, %v123
    %133 = vst.msk [vmem:[#allocation7 + $0x18] sm:$0xff] %vm129, %v126
    // Predicated region
    $region22: #{tpu_custom_call.1} parent=1 // pred_check
      _
    $region23: #{tpu_custom_call.1} parent=1 // pred_check_branch
      %135 = sbr.rel (0) target = $region25
    $region24: #{tpu_custom_call.1} parent=1 // pred_region
      %s137 = ssub.s32 512, 512
      %138 = vsyncadd [#allocation4], %s137
      %s139 = sshll.u32 [#allocation7], 4
      %s140 = int_to_ptr.vmem [resolvable:$true] %s139
      %145 = dma.vmem_to_hbm [thread:$0]  %s140, 512, %s3, [#allocation4], 128, 128, 8
    $region25: #{tpu_custom_call.1} parent=1 // pred_fallthru
      _
    // Predicated region
    $region26: #{tpu_custom_call.1} parent=1 // pred_check
      _
    $region27: #{tpu_custom_call.1} parent=1 // pred_check_branch
      %147 = sbr.rel (0) target = $region29
    $region28: #{tpu_custom_call.1} parent=1 // pred_region
      %148 = dma.done [#allocation4], 512
    $region29: #{tpu_custom_call.1} parent=1 // pred_fallthru
      _
    %149 = vsyncpa [#allocation3], 1
    %150 = vsyncpa [#allocation6], 1
    %151 = vsyncpa [#allocation4], 1

</llo_original>
